<compile_context>
chip_gen: v5e
topology: v5e:2x2
jax: 0.10.0
libtpu: 0.0.40
codegen_flags: <defaults>
</compile_context>

<pallas_src>
import functools

import jax
import jax.numpy as jnp
from jax.experimental import pallas as pl
from jax.experimental.pallas import tpu as pltpu


@functools.lru_cache(maxsize=None)
def _roll_sign():
    """pltpu.roll follows np.roll semantics (element i -> i+shift).  The depthwise
    taps depend on that sign convention, so pin it once with a tiny probe kernel
    instead of assuming it silently."""
    def probe(x_ref, o_ref):
        o_ref[...] = pltpu.roll(x_ref[...], 1, 1)

    x = jax.lax.broadcasted_iota(jnp.float32, (8, 128), 1)
    y = pl.pallas_call(probe,
                       out_shape=jax.ShapeDtypeStruct((8, 128), jnp.float32))(x)
    # np.roll semantics => index 0 now holds the old last element.
    return -1 if bool(y[0, 0] == 127.0) else 1


def _mbconv_kernel(x_ref,
                   w_exp_ref, exp_b_ref,
                   w_dw_ref, dw_b_ref,
                   se_w1_ref, se_b1_ref, se_w2_ref, se_b2_ref,
                   w_proj_ref, proj_b_ref,
                   o_ref,
                   *, K, H, W, use_residual, roll_sign):
    HW = H * W
    Cmid = w_dw_ref.shape[0]
    pad = (K - 1) // 2

    x = x_ref[0]                                                # (Cin, H*W) f32

    # ---- expand: 1x1 conv (BN scale pre-folded) + bias + ReLU6.
    #      bf16 MXU operands, f32 accumulation.
    h = jnp.dot(w_exp_ref[...].astype(jnp.bfloat16), x.astype(jnp.bfloat16),
                preferred_element_type=jnp.float32)             # (Cmid, H*W)
    h = jnp.clip(h + exp_b_ref[...], 0.0, 6.0)

    # ---- depthwise KxK, stride 1, SAME.  Spatial sits on the lane axis, so each
    #      tap is a lane roll (XLU) + a boundary mask.
    # TODO(synk): stride > 1 depthwise conv not implemented (this block uses stride=1).
    lane = jax.lax.broadcasted_iota(jnp.int32, (Cmid, HW), 1)
    row, col = lane // W, lane % W
    acc = jnp.zeros((Cmid, HW), jnp.float32)
    for kh in range(K):
        for kw in range(K):
            dh, dw = kh - pad, kw - pad
            off = dh * W + dw
            src = h if off == 0 else pltpu.roll(h, (roll_sign * off) % HW, 1)
            conds = []
            if dh < 0:
                conds.append(row >= -dh)
            if dh > 0:
                conds.append(row < H - dh)
            if dw < 0:
                conds.append(col >= -dw)
            if dw > 0:
                conds.append(col < W - dw)
            if conds:
                src = jnp.where(functools.reduce(jnp.logical_and, conds), src, 0.0)
            tap = kh * K + kw
            acc = acc + src * w_dw_ref[:, tap:tap + 1]          # per-channel weight
    acc = jnp.clip(acc + dw_b_ref[...], 0.0, 6.0)               # (Cmid, H*W)

    # ---- Squeeze-and-Excitation, PyTorch op order, all f32 on VPU/XLU.
    pooled = jnp.sum(acc, axis=1, keepdims=True) * (1.0 / HW)         # (Cmid, 1)
    t = jnp.sum(se_w1_ref[...] * pooled, axis=0, keepdims=True)       # (1, Cse)
    s = jnp.maximum(t + se_b1_ref[...], 0.0)                          # (1, Cse)
    glog = jnp.sum(se_w2_ref[...] * s, axis=1, keepdims=True)         # (Cmid, 1)
    g = jax.nn.sigmoid(glog + se_b2_ref[...])                         # (Cmid, 1)
    acc = acc * g                                                     # gate, lane-broadcast

    # ---- project: 1x1 conv (BN scale pre-folded) + bias (+ residual).
    out = jnp.dot(w_proj_ref[...].astype(jnp.bfloat16), acc.astype(jnp.bfloat16),
                  preferred_element_type=jnp.float32)           # (Cout, H*W)
    out = out + proj_b_ref[...]
    if use_residual:
        out = out + x
    o_ref[0] = out


def _fold_params(params):
    """Host-side BN folding + layout prep (done once).  The kernel sees folded
    weights as (out_ch, in_ch) plus per-channel (C, 1) biases; SE weights are laid
    out (Cmid, Cse) so both FCs are broadcast-multiply + reduce."""
    K = params['w_dw'].shape[0]
    w_exp_t = (params['w_exp'] * params['exp_scale']).T                  # (Cmid, Cin)
    exp_b = params['exp_bias'].T                                         # (Cmid, 1)
    w_dw_t = (params['w_dw'] * params['dw_scale']).reshape(K * K, -1).T  # (Cmid, K*K)
    dw_b = params['dw_bias'].T                                           # (Cmid, 1)
    se_w1 = params['se_w1']                                              # (Cmid, Cse)
    se_b1 = params['se_b1']                                              # (1, Cse)
    se_w2_t = params['se_w2'].T                                          # (Cmid, Cse)
    se_b2 = params['se_b2'].T                                            # (Cmid, 1)
    w_proj_t = (params['w_proj'] * params['proj_scale']).T               # (Cout, Cmid)
    proj_b = params['proj_bias'].T                                       # (Cout, 1)
    return [w_exp_t, exp_b, w_dw_t, dw_b,
            se_w1, se_b1, se_w2_t, se_b2, w_proj_t, proj_b]


def mbconv_pallas(x_nchw, params, *, K, stride, use_residual):
    # TODO(synk): stride > 1 depthwise conv not implemented (demo config uses stride=1).
    assert stride == 1, "only stride=1 supported"
    N, Cin, H, W = x_nchw.shape
    HW = H * W
    Cout = params['w_proj'].shape[1]

    # NCHW is already channel-major: flattening (H, W) is a free reshape and puts
    # H*W (a multiple of 128) on the lanes.
    x = x_nchw.reshape(N, Cin, HW).astype(jnp.float32)
    folded = _fold_params(params)

    kern = functools.partial(_mbconv_kernel, K=K, H=H, W=W,
                             use_residual=use_residual, roll_sign=_roll_sign())

    def const_spec(a):
        return pl.BlockSpec(a.shape, lambda b, _nd=a.ndim: (0,) * _nd)

    out = pl.pallas_call(
        kern,
        out_shape=jax.ShapeDtypeStruct((N, Cout, HW), jnp.float32),
        grid=(N,),
        in_specs=[pl.BlockSpec((1, Cin, HW), lambda b: (b, 0, 0))]
                 + [const_spec(a) for a in folded],
        out_specs=pl.BlockSpec((1, Cout, HW), lambda b: (b, 0, 0)),
        # Batch images are independent -> "parallel" lets Mosaic shard the grid
        # across the two TensorCores on v7x (no-op on v5e/v6e).
        compiler_params=pltpu.CompilerParams(dimension_semantics=("parallel",)),
    )(x, *folded)
    return out.reshape(N, Cout, H, W)


def mbconv_ref(x_nchw, params, *, K, use_residual):
    """Pure-JAX reference (lax convs, NHWC).  The 1x1 convs mirror the kernel's
    bf16 MXU operand precision (round operands to bf16, accumulate in f32); the
    depthwise conv and the SE block are f32 at HIGHEST precision, exactly like the
    kernel which keeps those paths in f32."""
    x = jnp.transpose(x_nchw, (0, 2, 3, 1)).astype(jnp.float32)
    Cin = x.shape[-1]
    Cmid = params['w_exp'].shape[1]
    pad = (K - 1) // 2
    dn = ('NHWC', 'HWIO', 'NHWC')
    hi = jax.lax.Precision.HIGHEST

    def bf16(a):  # round to bf16 operand precision, keep the math in f32
        return a.astype(jnp.bfloat16).astype(jnp.float32)

    w_exp = bf16(params['w_exp'] * params['exp_scale'])
    h = jax.lax.conv_general_dilated(bf16(x), w_exp.reshape(1, 1, Cin, Cmid), (1, 1),
                                     'VALID', dimension_numbers=dn, precision=hi)
    h = jnp.clip(h + params['exp_bias'][0], 0.0, 6.0)

    w_dw = (params['w_dw'] * params['dw_scale'][0]).reshape(K, K, 1, Cmid)
    h = jax.lax.conv_general_dilated(h, w_dw, (1, 1), [(pad, pad), (pad, pad)],
                                     dimension_numbers=dn,
                                     feature_group_count=Cmid, precision=hi)
    h = jnp.clip(h + params['dw_bias'][0], 0.0, 6.0)

    pooled = jnp.mean(h, axis=(1, 2), keepdims=True)
    s = jnp.maximum(jnp.einsum('nabc,cd->nabd', pooled, params['se_w1'],
                               precision=hi) + params['se_b1'][0], 0.0)
    s = jax.nn.sigmoid(jnp.einsum('nabc,cd->nabd', s, params['se_w2'],
                                  precision=hi) + params['se_b2'][0])
    h = h * s

    w_proj = bf16(params['w_proj'] * params['proj_scale'])
    out = jnp.einsum('nhwc,cd->nhwd', bf16(h), w_proj, precision=hi)
    out = out + params['proj_bias'][0]
    if use_residual:
        out = out + x
    return jnp.transpose(out, (0, 3, 1, 2))


def make_params(key, Cin, Cmid, Cse, Cout, K):
    ks = jax.random.split(key, 18)
    eps = 1e-5  # nn.BatchNorm2d default

    def bn_fold(kg, kb, km, kv, C):
        gamma = 1.0 + 0.1 * jax.random.normal(kg, (C,), jnp.float32)
        beta = 0.1 * jax.random.normal(kb, (C,), jnp.float32)
        mean = 0.1 * jax.random.normal(km, (C,), jnp.float32)
        var = 0.5 + 0.1 * jnp.abs(jax.random.normal(kv, (C,), jnp.float32))
        scale = gamma * jax.lax.rsqrt(var + eps)
        bias = beta - mean * scale
        return scale.reshape(1, C), bias.reshape(1, C)

    exp_s, exp_b = bn_fold(ks[0], ks[1], ks[2], ks[3], Cmid)
    dw_s, dw_b = bn_fold(ks[4], ks[5], ks[6], ks[7], Cmid)
    pr_s, pr_b = bn_fold(ks[8], ks[9], ks[10], ks[11], Cout)

    return dict(
        w_exp=0.2 * jax.random.normal(ks[12], (Cin, Cmid), jnp.float32),
        exp_scale=exp_s, exp_bias=exp_b,
        w_dw=0.2 * jax.random.normal(ks[13], (K, K, Cmid), jnp.float32),
        dw_scale=dw_s, dw_bias=dw_b,
        se_w1=0.3 * jax.random.normal(ks[14], (Cmid, Cse), jnp.float32),
        se_b1=0.05 * jax.random.normal(ks[16], (1, Cse), jnp.float32),
        se_w2=0.3 * jax.random.normal(ks[15], (Cse, Cmid), jnp.float32),
        se_b2=0.05 * jax.random.normal(ks[17], (1, Cmid), jnp.float32),
        w_proj=0.2 * jax.random.normal(jax.random.fold_in(key, 99), (Cmid, Cout), jnp.float32),
        proj_scale=pr_s, proj_bias=pr_b,
    )


if __name__ == "__main__":
    # MBConv config: kernel=3, in_channels=4, filters=4, strides=1,
    # expand_ratio=6 -> mid_channels=24, reduction_ratio=4 -> SE hidden=6.
    K, Cin, Cout, stride, expand_ratio, reduction_ratio = 3, 4, 4, 1, 6, 4
    Cmid = Cin * expand_ratio
    Cse = Cmid // reduction_ratio
    use_residual = (Cin == Cout) and (stride == 1)

    key = jax.random.PRNGKey(0)
    kx, kp = jax.random.split(key)
    x = jax.random.normal(kx, (2, Cin, 16, 16), jnp.float32)   # NCHW, like PyTorch
    params = make_params(kp, Cin, Cmid, Cse, Cout, K)

    out = jax.block_until_ready(
        mbconv_pallas(x, params, K=K, stride=stride, use_residual=use_residual))
    ref = jax.block_until_ready(
        mbconv_ref(x, params, K=K, use_residual=use_residual))

    assert out.shape == (2, Cout, 16, 16), out.shape
    # Both sides round the 1x1-conv operands to bf16 (MXU-native) and keep the
    # depthwise/SE paths in f32, so the only residual noise is f32 accumulation
    # order and the EUP exp/sigmoid approximation (<< 1e-2); structural errors
    # are >= ~5e-2 here.
    err = float(jnp.max(jnp.abs(out - ref)))
    assert jnp.allclose(out, ref, atol=1e-2, rtol=1e-2), f"max abs err {err}"

    print("KERNEL_OK")
</pallas_src>

<mosaic_0001>
module attributes {stable_mosaic.version = 11 : i64} {
  func.func @probe(%arg0: memref<8x128xf32, #tpu.memory_space<vmem>>, %arg1: memref<8x128xf32, #tpu.memory_space<vmem>>) attributes {dimension_semantics = [], scalar_prefetch = 0 : i64, scratch_operands = 0 : i64, tpu.core_type = #tpu.core_type<tc>} {
    %c0 = arith.constant 0 : index
    %c0_0 = arith.constant 0 : index
    %0 = vector.load %arg0[%c0, %c0_0] : memref<8x128xf32, #tpu.memory_space<vmem>>, vector<8x128xf32>
    %c1_i32 = arith.constant 1 : i32
    %1 = tpu.dynamic_rotate %0 by %c1_i32 dim 1 : vector<8x128xf32>, i32 -> vector<8x128xf32>
    %c0_1 = arith.constant 0 : index
    %c0_2 = arith.constant 0 : index
    %2 = vector.load %arg1[%c0_1, %c0_2] : memref<8x128xf32, #tpu.memory_space<vmem>>, vector<8x128xf32>
    tpu.vector_store %arg1[%c0_1, %c0_2], %1 {strides = array<i32>} : memref<8x128xf32, #tpu.memory_space<vmem>>, vector<8x128xf32>,
    return
  }
}

</mosaic_0001>

<llo_original>
// kernel: tpu_custom_call.1
$region0: #{tpu_custom_call.1}
  #allocation0 [shape = 'u32[]', space=smem, size = 0x4, offset = 0x4, fixed_abs, tag = 'smem constant byte address 0x4 - core index']
  #allocation1 [shape = 'u32[72,128]{1,0:T(1,128)}', space=vmem, size = 0x9000, scoped, tag = 'internal scratch']
  %s0 = inlined_call_operand.hbm [shape: f32[8,128], index: 0, kind: input, shape index: {}]
  %s1 = inlined_call_operand.hbm [shape: f32[8,128], index: 1, kind: output, shape index: {}]
  %s2 = sld [smem:[#allocation0]]
  $region18: #{tpu_custom_call.1} parent=0
    _
  %s4 = ssub.s32 1, %s2
  %s5 = scalar_select 0, %s4, %s2
  $region1: #{tpu_custom_call.1} parent=0
    #allocation2 [shape = 'u8[4096]{0}', space=vmem, size = 0x1000, scoped, tag = 'input window, operand 0, single buffered']
    #allocation3 [shape = 's32[1]{0}', space=sflag, size = 0x4, scoped, tag = 'scoped memory for tpu_custom_call.1']
    #allocation4 [shape = 's32[1]{0}', space=sflag, size = 0x4, scoped, tag = 'scoped memory for tpu_custom_call.1']
    #allocation5 [shape = 'u8[4096]{0}', space=vmem, size = 0x1000, scoped, tag = 'output window, operand 0, single buffered']
    %6 = vsyncpa [#allocation3], 0
    %7 = vsyncpa [#allocation4], 0
    // Predicated region
    $region2: #{tpu_custom_call.1} parent=1 // pred_check
      _
    $region3: #{tpu_custom_call.1} parent=1 // pred_check_branch
      %9 = sbr.rel (0) target = $region5
    $region4: #{tpu_custom_call.1} parent=1 // pred_region
      %11 = vsyncadd [#allocation3], 0
      %s13 = sshll.u32 %s0, 4
      %s14 = int_to_ptr.hbm [resolvable:$true] %s13
      %s15 = sshll.u32 [#allocation2], 4
      %s16 = int_to_ptr.vmem [resolvable:$true] %s15
      %18 = dma.hbm_to_vmem [thread:$0]  %s14, 128, %s16, [#allocation3]
    $region5: #{tpu_custom_call.1} parent=1 // pred_fallthru
      _
    // Predicated region
    $region6: #{tpu_custom_call.1} parent=1 // pred_check
      _
    $region7: #{tpu_custom_call.1} parent=1 // pred_check_branch
      %20 = sbr.rel (0) target = $region9
    $region8: #{tpu_custom_call.1} parent=1 // pred_region
      %22 = dma.done [#allocation3], 128
    $region9: #{tpu_custom_call.1} parent=1 // pred_fallthru
      _
    %v23 = vld [vmem:[#allocation2] sm:$0xff]
    %24 = vrot.lane.b32.xlu0 %v23, 1
    %v25 = vpop.permute.xlu0 %24
    %26 = vst [vmem:[#allocation5] sm:$0xff] %v25
    // Predicated region
    $region10: #{tpu_custom_call.1} parent=1 // pred_check
      _
    $region11: #{tpu_custom_call.1} parent=1 // pred_check_branch
      %28 = sbr.rel (0) target = $region13
    $region12: #{tpu_custom_call.1} parent=1 // pred_region
      %30 = vsyncadd [#allocation4], 0
      %s32 = sshll.u32 [#allocation5], 4
      %s33 = int_to_ptr.vmem [resolvable:$true] %s32
      %s34 = sshll.u32 %s1, 4
      %s35 = int_to_ptr.hbm [resolvable:$true] %s34
      %37 = dma.vmem_to_hbm [thread:$0]  %s33, 128, %s35, [#allocation4]
    $region13: #{tpu_custom_call.1} parent=1 // pred_fallthru
      _
    // Predicated region
    $region14: #{tpu_custom_call.1} parent=1 // pred_check
      _
    $region15: #{tpu_custom_call.1} parent=1 // pred_check_branch
      %39 = sbr.rel (0) target = $region17
    $region16: #{tpu_custom_call.1} parent=1 // pred_region
      %41 = dma.done [#allocation4], 128
    $region17: #{tpu_custom_call.1} parent=1 // pred_fallthru
      _
    %42 = vsyncpa [#allocation3], 1
    %43 = vsyncpa [#allocation4], 1

</llo_original>
